<compile_context>
chip_gen: v7x
topology: tpu7x:2x2x1
jax: 0.10.0
libtpu: 0.0.40
codegen_flags: <defaults>
</compile_context>

<pallas_src>
import functools

import jax
import jax.numpy as jnp
from jax import lax
from jax.experimental import pallas as pl
from jax.experimental.pallas import tpu as pltpu

_LANE = 128
_SUBLANE = 8
_CHUNK_ROWS = 128  # (128,128) f32 chunk = 16 vregs per live value


def _device_kind() -> str:
    try:
        return jax.devices()[0].device_kind.lower()
    except Exception:  # pragma: no cover - defensive
        return ""


def _block_rows_cap(kind: str, itemsize: int) -> int:
    """Per-generation streaming-tile cap (rows of 128 lanes).

    Sized so 2 inputs x 2 pipeline buffers stays well inside the scoped-VMEM
    default (v5e 16 MiB, v6e/v7x 32 MiB) without touching vmem_limit_bytes.
    """
    if "v7" in kind:
        base = 8192        # 4 MiB per f32 tile -> 16 MiB double-buffered
    elif "v6" in kind:
        base = 4096        # 2 MiB per f32 tile -> 8 MiB double-buffered
    else:
        base = 2048        # v5e & unknown: 1 MiB per f32 tile -> 4 MiB
    # Keep DMA bytes per grid step roughly constant for narrow dtypes.
    scale = max(1, 4 // max(int(itemsize), 1))
    return base * scale


def _num_splits(kind: str) -> int:
    # Only v7x exposes 2 TensorCores per Pallas device; on single-TC chips a
    # 2-way split only adds a duplicated (masked) block of wasted DMA/compute.
    # TODO(synk): confirm with xprof that the leading "parallel" axis actually
    # lands on both v7x TensorCores; otherwise switch to an explicit core split.
    return 2 if "v7" in kind else 1


def _partial_sums(p, t):
    """Per-chunk partial sums folded to (8, 128) with pure vreg adds."""
    log_p = jnp.maximum(jnp.log(p), -100.0)        # torch.nn.BCELoss clamp
    log_1mp = jnp.maximum(jnp.log1p(-p), -100.0)
    # Un-negated BCE term: t*log(p) + (1-t)*log(1-p); negate + /n in epilogue.
    bce = log_1mp + t * (log_p - log_1mp)
    fold = lambda x: jnp.sum(x.reshape(-1, _SUBLANE, _LANE), axis=0)
    return fold(p * t), fold(p + t), fold(bce)


def _dice_bce_kernel(p_ref, t_ref, inter_ref, spt_ref, bce_ref, *,
                     rows_valid, block_rows, chunk_rows, blocks_per_split,
                     any_tail, unroll):
    c = pl.program_id(0)   # split axis ("parallel")
    i = pl.program_id(1)   # reduction axis ("arbitrary", sequential)

    @pl.when(i == 0)
    def _():
        inter_ref[...] = jnp.zeros_like(inter_ref)
        spt_ref[...] = jnp.zeros_like(spt_ref)
        bce_ref[...] = jnp.zeros_like(bce_ref)

    blk = c * blocks_per_split + i          # logical (unclamped) block index
    n_chunks = block_rows // chunk_rows
    zero = jnp.zeros((_SUBLANE, _LANE), jnp.float32)

    def load_chunk(r0):
        p = p_ref[pl.ds(r0, chunk_rows), :].astype(jnp.float32)
        t = t_ref[pl.ds(r0, chunk_rows), :].astype(jnp.float32)
        return p, t

    def write_out(sums):
        inter_ref[...] += sums[0][None]
        spt_ref[...] += sums[1][None]
        bce_ref[...] += sums[2][None]

    def run_unmasked():
        def body(j, carry):
            r0 = pl.multiple_of(j * chunk_rows, chunk_rows)
            p, t = load_chunk(r0)
            s = _partial_sums(p, t)
            return (carry[0] + s[0], carry[1] + s[1], carry[2] + s[2])

        sums = lax.fori_loop(0, n_chunks, body, (zero, zero, zero),
                             unroll=unroll)
        write_out(sums)

    def run_masked():
        start_row = blk * block_rows
        live = rows_valid - start_row                      # > 0 in this branch
        n_live = (live + (chunk_rows - 1)) // chunk_rows   # chunks with data

        def body(j, carry):
            r0 = pl.multiple_of(j * chunk_rows, chunk_rows)
            p, t = load_chunk(r0)
            row = lax.broadcasted_iota(jnp.int32, (chunk_rows, _LANE), 0)
            valid = (start_row + r0 + row) < rows_valid
            # Mask BEFORE any arithmetic: OOB rows of the VMEM tile are stale.
            p = jnp.where(valid, p, 0.0)
            t = jnp.where(valid, t, 0.0)
            s = _partial_sums(p, t)
            return (carry[0] + s[0], carry[1] + s[1], carry[2] + s[2])

        sums = lax.fori_loop(0, n_live, body, (zero, zero, zero))
        write_out(sums)

    if any_tail:
        start_row = blk * block_rows
        end_row = start_row + block_rows

        @pl.when(end_row <= rows_valid)            # fully valid: no mask cost
        def _():
            run_unmasked()

        @pl.when(jnp.logical_and(start_row < rows_valid, end_row > rows_valid))
        def _():
            run_masked()
        # Blocks fully past rows_valid (clamped duplicates) contribute nothing.
    else:
        run_unmasked()


def dice_bce_loss(inputs, targets):
    """inputs: probabilities in (0,1); targets: masks. Any (matching) shape."""
    p_flat = inputs.reshape(-1)
    t_flat = targets.reshape(-1)
    n = int(p_flat.shape[0])

    n_lane = (n // _LANE) * _LANE          # elements handled by the kernel
    inter = jnp.float32(0.0)
    spt = jnp.float32(0.0)
    bce_s = jnp.float32(0.0)               # un-negated BCE sum

    if n_lane > 0:
        kind = _device_kind()
        itemsize = max(jnp.dtype(inputs.dtype).itemsize,
                       jnp.dtype(targets.dtype).itemsize)
        cap = _block_rows_cap(kind, itemsize)

        rows = n_lane // _LANE
        p2 = (p_flat[:n_lane] if n_lane != n else p_flat).reshape(rows, _LANE)
        t2 = (t_flat[:n_lane] if n_lane != n else t_flat).reshape(rows, _LANE)

        if rows < _SUBLANE:
            # Tiny arrays only: pad to one (8,128) tile (negligible copy;
            # zero pads contribute exactly 0 to every partial sum).
            pad_r = _SUBLANE - rows
            p2 = jnp.pad(p2, ((0, pad_r), (0, 0)))
            t2 = jnp.pad(t2, ((0, pad_r), (0, 0)))
            rows = _SUBLANE

        if rows >= _CHUNK_ROWS:
            chunk_rows = _CHUNK_ROWS
            block_rows = min(cap, (rows // chunk_rows) * chunk_rows)
        else:
            block_rows = (rows // _SUBLANE) * _SUBLANE
            chunk_rows = block_rows

        n_blocks = -(-rows // block_rows)
        n_splits = _num_splits(kind) if n_blocks >= 2 else 1
        bps = -(-n_blocks // n_splits)                   # blocks per split
        any_tail = (n_splits * bps * block_rows) > rows
        n_chunks = block_rows // chunk_rows
        unroll = True if n_chunks <= 32 else 8

        def in_map(c, i):
            # Clamp so duplicated trailing blocks stay in range; the kernel
            # skips their contribution entirely.
            return (jnp.minimum(c * bps + i, n_blocks - 1), 0)

        out_map = lambda c, i: (c, 0, 0)
        out_sds = jax.ShapeDtypeStruct((n_splits, _SUBLANE, _LANE), jnp.float32)
        out_spec = pl.BlockSpec((1, _SUBLANE, _LANE), out_map)

        kernel = functools.partial(
            _dice_bce_kernel, rows_valid=rows, block_rows=block_rows,
            chunk_rows=chunk_rows, blocks_per_split=bps,
            any_tail=any_tail, unroll=unroll)

        inter_p, spt_p, bce_p = pl.pallas_call(
            kernel,
            out_shape=(out_sds, out_sds, out_sds),
            grid_spec=pltpu.PrefetchScalarGridSpec(
                num_scalar_prefetch=0,
                grid=(n_splits, bps),
                in_specs=[
                    pl.BlockSpec((block_rows, _LANE), in_map),
                    pl.BlockSpec((block_rows, _LANE), in_map),
                ],
                out_specs=[out_spec, out_spec, out_spec],
            ),
            compiler_params=pltpu.CompilerParams(
                dimension_semantics=("parallel", "arbitrary")),
        )(p2, t2)

        # Tiny epilogue: combine per-split (8,128) partials.
        inter = inter + jnp.sum(inter_p)
        spt = spt + jnp.sum(spt_p)
        bce_s = bce_s + jnp.sum(bce_p)

    if n_lane != n:
        # <=127 leftover elements (lane-misaligned flat length): fold into the
        # epilogue instead of padding/copying the whole input through HBM.
        pt = p_flat[n_lane:].astype(jnp.float32)
        tt = t_flat[n_lane:].astype(jnp.float32)
        log_p = jnp.maximum(jnp.log(pt), -100.0)
        log_1mp = jnp.maximum(jnp.log1p(-pt), -100.0)
        inter = inter + jnp.sum(pt * tt)
        spt = spt + jnp.sum(pt + tt)
        bce_s = bce_s + jnp.sum(log_1mp + tt * (log_p - log_1mp))

    dice = (2.0 * inter + 1.0) / (spt + 1.0)
    # bce_mean = -bce_s / n  (bce_s is the un-negated sum)
    return 1.0 - dice - bce_s / jnp.float32(n)


def _reference(inputs, targets):
    p = inputs.reshape(-1).astype(jnp.float32)
    t = targets.reshape(-1).astype(jnp.float32)
    inter = jnp.sum(p * t)
    dice = (2.0 * inter + 1.0) / (jnp.sum(p) + jnp.sum(t) + 1.0)
    log_p = jnp.maximum(jnp.log(p), -100.0)
    log_1mp = jnp.maximum(jnp.log1p(-p), -100.0)
    bce = jnp.mean(-(t * log_p + (1.0 - t) * log_1mp))
    return 1.0 - dice + bce


if __name__ == "__main__":
    key = jax.random.PRNGKey(0)

    cases = [
        ((2, 1, 16, 16), jnp.float32),    # tiny: single (8,128) block
        ((2, 1, 15, 15), jnp.float32),    # lane-misaligned: epilogue tail
        ((2, 1, 400, 400), jnp.float32),  # multi-block: masked straddle block
        ((2, 1, 64, 64), jnp.bfloat16),   # narrow dtype: in-kernel cast
    ]
    loss = None
    for idx, (shape, dt) in enumerate(cases):
        k1, k2 = jax.random.split(jax.random.fold_in(key, idx))
        logits = jax.random.normal(k1, shape, dtype=jnp.float32)
        inputs = jax.nn.sigmoid(logits).astype(dt)          # probs in (0,1)
        targets = (jax.random.uniform(k2, shape) > 0.5).astype(jnp.float32)

        loss = dice_bce_loss(inputs, targets)
        jax.block_until_ready(loss)

        ref = _reference(inputs, targets)
        assert jnp.allclose(loss, ref, rtol=1e-5, atol=1e-5), (shape, dt, loss, ref)

    print("KERNEL_OK")
</pallas_src>

<mosaic_0001>
module attributes {stable_mosaic.version = 11 : i64} {
  func.func @_dice_bce_kernel(%arg0: i32, %arg1: i32, %arg2: memref<8x128xf32, #tpu.memory_space<vmem>>, %arg3: memref<8x128xf32, #tpu.memory_space<vmem>>, %arg4: memref<1x8x128xf32, #tpu.memory_space<vmem>>, %arg5: memref<1x8x128xf32, #tpu.memory_space<vmem>>, %arg6: memref<1x8x128xf32, #tpu.memory_space<vmem>>) attributes {dimension_semantics = [#tpu.dimension_semantics<parallel>, #tpu.dimension_semantics<arbitrary>], iteration_bounds = array<i64: 1, 1>, scalar_prefetch = 0 : i64, scratch_operands = 0 : i64, tpu.core_type = #tpu.core_type<tc>, window_params = [{transform_indices = @transform_0, window_bounds = array<i64: 8, 128>}, {transform_indices = @transform_1, window_bounds = array<i64: 8, 128>}, {transform_indices = @transform_2, window_bounds = array<i64: 1, 8, 128>}, {transform_indices = @transform_3, window_bounds = array<i64: 1, 8, 128>}, {transform_indices = @transform_4, window_bounds = array<i64: 1, 8, 128>}]} {
    %c0_i32 = arith.constant 0 : i32
    %0 = arith.cmpi eq, %arg1, %c0_i32 : i32
    %1 = arith.extui %0 : i1 to i32
    %c0_i32_0 = arith.constant 0 : i32
    %2 = arith.cmpi ne, %1, %c0_i32_0 : i32
    scf.if %2 {
      %cst_27 = arith.constant 0.000000e+00 : f32
      %44 = vector.broadcast %cst_27 : f32 to vector<1x8x128xf32>
      %c0_28 = arith.constant 0 : index
      %c0_29 = arith.constant 0 : index
      %c0_30 = arith.constant 0 : index
      %45 = vector.load %arg4[%c0_28, %c0_29, %c0_30] : memref<1x8x128xf32, #tpu.memory_space<vmem>>, vector<1x8x128xf32>
      tpu.vector_store %arg4[%c0_28, %c0_29, %c0_30], %44 {strides = array<i32>} : memref<1x8x128xf32, #tpu.memory_space<vmem>>, vector<1x8x128xf32>,
      %cst_31 = arith.constant 0.000000e+00 : f32
      %46 = vector.broadcast %cst_31 : f32 to vector<1x8x128xf32>
      %c0_32 = arith.constant 0 : index
      %c0_33 = arith.constant 0 : index
      %c0_34 = arith.constant 0 : index
      %47 = vector.load %arg5[%c0_32, %c0_33, %c0_34] : memref<1x8x128xf32, #tpu.memory_space<vmem>>, vector<1x8x128xf32>
      tpu.vector_store %arg5[%c0_32, %c0_33, %c0_34], %46 {strides = array<i32>} : memref<1x8x128xf32, #tpu.memory_space<vmem>>, vector<1x8x128xf32>,
      %cst_35 = arith.constant 0.000000e+00 : f32
      %48 = vector.broadcast %cst_35 : f32 to vector<1x8x128xf32>
      %c0_36 = arith.constant 0 : index
      %c0_37 = arith.constant 0 : index
      %c0_38 = arith.constant 0 : index
      %49 = vector.load %arg6[%c0_36, %c0_37, %c0_38] : memref<1x8x128xf32, #tpu.memory_space<vmem>>, vector<1x8x128xf32>
      tpu.vector_store %arg6[%c0_36, %c0_37, %c0_38], %48 {strides = array<i32>} : memref<1x8x128xf32, #tpu.memory_space<vmem>>, vector<1x8x128xf32>,
    } else {
    }
    %cst = arith.constant 0.000000e+00 : f32
    %3 = vector.broadcast %cst : f32 to vector<8x128xf32>
    %c0_i32_1 = arith.constant 0 : i32
    %c8_i32 = arith.constant 8 : i32
    %4 = arith.muli %c0_i32_1, %c8_i32 : i32
    %5 = tpu.assume_multiple %4, 8 : i32
    %6 = arith.index_cast %5 : i32 to index
    %c0 = arith.constant 0 : index
    %7 = vector.load %arg2[%6, %c0] : memref<8x128xf32, #tpu.memory_space<vmem>>, vector<8x128xf32>
    %8 = arith.index_cast %5 : i32 to index
    %c0_2 = arith.constant 0 : index
    %9 = vector.load %arg3[%8, %c0_2] : memref<8x128xf32, #tpu.memory_space<vmem>>, vector<8x128xf32>
    %10 = math.log %7 : vector<8x128xf32>
    %cst_3 = arith.constant -1.000000e+02 : f32
    %11 = vector.broadcast %cst_3 : f32 to vector<8x128xf32>
    %12 = arith.maximumf %10, %11 : vector<8x128xf32>
    %cst_4 = arith.constant 0.000000e+00 : f32
    %13 = vector.broadcast %cst_4 : f32 to vector<8x128xf32>
    %14 = arith.subf %13, %7 : vector<8x128xf32>
    %15 = math.log1p %14 : vector<8x128xf32>
    %cst_5 = arith.constant -1.000000e+02 : f32
    %16 = vector.broadcast %cst_5 : f32 to vector<8x128xf32>
    %17 = arith.maximumf %15, %16 : vector<8x128xf32>
    %18 = arith.subf %12, %17 : vector<8x128xf32>
    %19 = arith.mulf %9, %18 : vector<8x128xf32>
    %20 = arith.addf %17, %19 : vector<8x128xf32>
    %21 = arith.mulf %7, %9 : vector<8x128xf32>
    %22 = vector.shape_cast %21 : vector<8x128xf32> to vector<1x8x128xf32>
    %cst_6 = arith.constant dense<0.000000e+00> : vector<8x128xf32>
    %23 = vector.multi_reduction <add>, %22, %cst_6 [0] : vector<1x8x128xf32> to vector<8x128xf32>
    %24 = arith.addf %7, %9 : vector<8x128xf32>
    %25 = vector.shape_cast %24 : vector<8x128xf32> to vector<1x8x128xf32>
    %cst_7 = arith.constant dense<0.000000e+00> : vector<8x128xf32>
    %26 = vector.multi_reduction <add>, %25, %cst_7 [0] : vector<1x8x128xf32> to vector<8x128xf32>
    %27 = vector.shape_cast %20 : vector<8x128xf32> to vector<1x8x128xf32>
    %cst_8 = arith.constant dense<0.000000e+00> : vector<8x128xf32>
    %28 = vector.multi_reduction <add>, %27, %cst_8 [0] : vector<1x8x128xf32> to vector<8x128xf32>
    %29 = arith.addf %3, %23 : vector<8x128xf32>
    %30 = arith.addf %3, %26 : vector<8x128xf32>
    %31 = arith.addf %3, %28 : vector<8x128xf32>
    %c1_i32 = arith.constant 1 : i32
    %c0_9 = arith.constant 0 : index
    %c0_10 = arith.constant 0 : index
    %c0_11 = arith.constant 0 : index
    %32 = vector.load %arg4[%c0_9, %c0_10, %c0_11] : memref<1x8x128xf32, #tpu.memory_space<vmem>>, vector<1x8x128xf32>
    %33 = vector.shape_cast %29 : vector<8x128xf32> to vector<1x8x128xf32>
    %34 = arith.addf %32, %33 : vector<1x8x128xf32>
    %c0_12 = arith.constant 0 : index
    %c0_13 = arith.constant 0 : index
    %c0_14 = arith.constant 0 : index
    %35 = vector.load %arg4[%c0_12, %c0_13, %c0_14] : memref<1x8x128xf32, #tpu.memory_space<vmem>>, vector<1x8x128xf32>
    tpu.vector_store %arg4[%c0_12, %c0_13, %c0_14], %34 {strides = array<i32>} : memref<1x8x128xf32, #tpu.memory_space<vmem>>, vector<1x8x128xf32>,
    %c0_15 = arith.constant 0 : index
    %c0_16 = arith.constant 0 : index
    %c0_17 = arith.constant 0 : index
    %36 = vector.load %arg5[%c0_15, %c0_16, %c0_17] : memref<1x8x128xf32, #tpu.memory_space<vmem>>, vector<1x8x128xf32>
    %37 = vector.shape_cast %30 : vector<8x128xf32> to vector<1x8x128xf32>
    %38 = arith.addf %36, %37 : vector<1x8x128xf32>
    %c0_18 = arith.constant 0 : index
    %c0_19 = arith.constant 0 : index
    %c0_20 = arith.constant 0 : index
    %39 = vector.load %arg5[%c0_18, %c0_19, %c0_20] : memref<1x8x128xf32, #tpu.memory_space<vmem>>, vector<1x8x128xf32>
    tpu.vector_store %arg5[%c0_18, %c0_19, %c0_20], %38 {strides = array<i32>} : memref<1x8x128xf32, #tpu.memory_space<vmem>>, vector<1x8x128xf32>,
    %c0_21 = arith.constant 0 : index
    %c0_22 = arith.constant 0 : index
    %c0_23 = arith.constant 0 : index
    %40 = vector.load %arg6[%c0_21, %c0_22, %c0_23] : memref<1x8x128xf32, #tpu.memory_space<vmem>>, vector<1x8x128xf32>
    %41 = vector.shape_cast %31 : vector<8x128xf32> to vector<1x8x128xf32>
    %42 = arith.addf %40, %41 : vector<1x8x128xf32>
    %c0_24 = arith.constant 0 : index
    %c0_25 = arith.constant 0 : index
    %c0_26 = arith.constant 0 : index
    %43 = vector.load %arg6[%c0_24, %c0_25, %c0_26] : memref<1x8x128xf32, #tpu.memory_space<vmem>>, vector<1x8x128xf32>
    tpu.vector_store %arg6[%c0_24, %c0_25, %c0_26], %42 {strides = array<i32>} : memref<1x8x128xf32, #tpu.memory_space<vmem>>, vector<1x8x128xf32>,
    return
  }
  func.func @transform_0(%arg0: i32, %arg1: i32) -> (i32, i32) {
    %c1_i32 = arith.constant 1 : i32
    %0 = arith.muli %arg0, %c1_i32 : i32
    %1 = arith.addi %0, %arg1 : i32
    %c0_i32 = arith.constant 0 : i32
    %2 = arith.minsi %1, %c0_i32 : i32
    %c0_i32_0 = arith.constant 0 : i32
    %c0_i32_1 = arith.constant 0 : i32
    return %2, %c0_i32_0 : i32, i32
  }
  func.func @transform_1(%arg0: i32, %arg1: i32) -> (i32, i32) {
    %c1_i32 = arith.constant 1 : i32
    %0 = arith.muli %arg0, %c1_i32 : i32
    %1 = arith.addi %0, %arg1 : i32
    %c0_i32 = arith.constant 0 : i32
    %2 = arith.minsi %1, %c0_i32 : i32
    %c0_i32_0 = arith.constant 0 : i32
    %c0_i32_1 = arith.constant 0 : i32
    return %2, %c0_i32_0 : i32, i32
  }
  func.func @transform_2(%arg0: i32, %arg1: i32) -> (i32, i32, i32) {
    %c0_i32 = arith.constant 0 : i32
    %c0_i32_0 = arith.constant 0 : i32
    %c0_i32_1 = arith.constant 0 : i32
    return %arg0, %c0_i32, %c0_i32_0 : i32, i32, i32
  }
  func.func @transform_3(%arg0: i32, %arg1: i32) -> (i32, i32, i32) {
    %c0_i32 = arith.constant 0 : i32
    %c0_i32_0 = arith.constant 0 : i32
    %c0_i32_1 = arith.constant 0 : i32
    return %arg0, %c0_i32, %c0_i32_0 : i32, i32, i32
  }
  func.func @transform_4(%arg0: i32, %arg1: i32) -> (i32, i32, i32) {
    %c0_i32 = arith.constant 0 : i32
    %c0_i32_0 = arith.constant 0 : i32
    %c0_i32_1 = arith.constant 0 : i32
    return %arg0, %c0_i32, %c0_i32_0 : i32, i32, i32
  }
}

</mosaic_0001>

<llo_original>
// kernel: tpu_custom_call.1
$region0: #{tpu_custom_call.1}
  #allocation0 [shape = 'u32[]', space=smem, size = 0x4, offset = 0x4, fixed_abs, tag = 'smem constant byte address 0x4 - core index']
  #allocation1 [shape = 'u32[144,128]{1,0:T(1,128)}', space=vmem, size = 0x12000, scoped, tag = 'internal scratch']
  %s0 = inlined_call_operand.hbm [shape: f32[8,128], index: 0, kind: input, shape index: {}]
  %s1 = inlined_call_operand.hbm [shape: f32[8,128], index: 1, kind: input, shape index: {}]
  %s2 = inlined_call_operand.hbm [shape: f32[1,8,128], index: 2, kind: output, shape index: {0}]
  %s3 = inlined_call_operand.hbm [shape: f32[1,8,128], index: 3, kind: output, shape index: {1}]
  %s4 = inlined_call_operand.hbm [shape: f32[1,8,128], index: 4, kind: output, shape index: {2}]
  %5 = xla_tuple %s2, %s3, %s4
  %s6 = sld [smem:[#allocation0]]
  $region46: #{tpu_custom_call.1} parent=0
    _
  %s8 = ssub.s32 1, %s6
  %s9 = scalar_select 0, %s8, %s6
  $region1: #{tpu_custom_call.1} parent=0
    #allocation2 [shape = 'u8[4096]{0}', space=vmem, size = 0x1000, scoped, tag = 'input window, operand 0, single buffered']
    #allocation3 [shape = 's32[1]{0}', space=sflag, size = 0x4, scoped, tag = 'scoped memory for tpu_custom_call.1']
    #allocation4 [shape = 's32[1]{0}', space=sflag, size = 0x4, scoped, tag = 'scoped memory for tpu_custom_call.1']
    #allocation5 [shape = 'u8[4096]{0}', space=vmem, size = 0x1000, scoped, tag = 'input window, operand 1, single buffered']
    #allocation6 [shape = 's32[1]{0}', space=sflag, size = 0x4, scoped, tag = 'scoped memory for tpu_custom_call.1']
    #allocation7 [shape = 'u8[4096]{0}', space=vmem, size = 0x1000, scoped, tag = 'output window, operand 0, single buffered']
    #allocation8 [shape = 'u8[4096]{0}', space=vmem, size = 0x1000, scoped, tag = 'output window, operand 1, single buffered']
    #allocation9 [shape = 's32[1]{0}', space=sflag, size = 0x4, scoped, tag = 'scoped memory for tpu_custom_call.1']
    #allocation10 [shape = 'u8[4096]{0}', space=vmem, size = 0x1000, scoped, tag = 'output window, operand 2, single buffered']
    %10 = vsyncpa [#allocation3], 0
    %11 = vsyncpa [#allocation6], 0
    %12 = vsyncpa [#allocation4], 0
    %13 = vsyncpa [#allocation9], 0
    // Predicated region
    $region2: #{tpu_custom_call.1} parent=1 // pred_check
      _
    $region3: #{tpu_custom_call.1} parent=1 // pred_check_branch
      %15 = sbr.rel (0) target = $region5
    $region4: #{tpu_custom_call.1} parent=1 // pred_region
      %s16 = sadd.s32 0, 0
      %p17 = scmp.lt.s32.totalorder %s16, 0
      %s18 = scalar_select %p17, %s16, 0
      %s20 = ssub.s32 128, 128
      %21 = vsyncadd [#allocation3], %s20
      %s22 = smul.addr %s18, 128
      %s23 = scalar_lea.hbm %s0, %s22
      %s25 = sshll.u32 [#allocation2], 4
      %s26 = int_to_ptr.vmem [resolvable:$true] %s25
      %28 = dma.hbm_to_vmem [thread:$0]  %s23, 128, %s26, [#allocation3]
    $region5: #{tpu_custom_call.1} parent=1 // pred_fallthru
      _
    // Predicated region
    $region6: #{tpu_custom_call.1} parent=1 // pred_check
      _
    $region7: #{tpu_custom_call.1} parent=1 // pred_check_branch
      %30 = sbr.rel (0) target = $region9
    $region8: #{tpu_custom_call.1} parent=1 // pred_region
      %s31 = sadd.s32 0, 0
      %p32 = scmp.lt.s32.totalorder %s31, 0
      %s33 = scalar_select %p32, %s31, 0
      %s35 = ssub.s32 128, 128
      %36 = vsyncadd [#allocation6], %s35
      %s37 = smul.addr %s33, 128
      %s38 = scalar_lea.hbm %s1, %s37
      %s40 = sshll.u32 [#allocation5], 4
      %s41 = int_to_ptr.vmem [resolvable:$true] %s40
      %43 = dma.hbm_to_vmem [thread:$0]  %s38, 128, %s41, [#allocation6]
    $region9: #{tpu_custom_call.1} parent=1 // pred_fallthru
      _
    // Predicated region
    $region10: #{tpu_custom_call.1} parent=1 // pred_check
      _
    $region11: #{tpu_custom_call.1} parent=1 // pred_check_branch
      %45 = sbr.rel (0) target = $region13
    $region12: #{tpu_custom_call.1} parent=1 // pred_region
      %46 = dma.done [#allocation3], 128
    $region13: #{tpu_custom_call.1} parent=1 // pred_fallthru
      _
    // Predicated region
    $region14: #{tpu_custom_call.1} parent=1 // pred_check
      _
    $region15: #{tpu_custom_call.1} parent=1 // pred_check_branch
      %48 = sbr.rel (0) target = $region17
    $region16: #{tpu_custom_call.1} parent=1 // pred_region
      %49 = dma.done [#allocation6], 128
    $region17: #{tpu_custom_call.1} parent=1 // pred_fallthru
      _
    %s50 = sadd.s32 0, 0
    %p51 = scmp.lt.s32.totalorder %s50, 0
    %s52 = scalar_select %p51, %s50, 0
    %s53 = sadd.s32 0, 0
    %p54 = scmp.lt.s32.totalorder %s53, 0
    %s55 = scalar_select %p54, %s53, 0
    %p56 = scmp.eq.s32.totalorder 0, 0
    // Predicated region
    $region18: #{tpu_custom_call.1} parent=1 // pred_check
      %p57 = pneg %p56
    $region19: #{tpu_custom_call.1} parent=1 // pred_check_branch
      %59 = sbr.rel (%p57) target = $region21
    $region20: #{tpu_custom_call.1} parent=1 // pred_region
      %60 = vst [vmem:[#allocation7] sm:$0xff] 0.0
      %61 = vst [vmem:[#allocation8] sm:$0xff] 0.0
      %62 = vst [vmem:[#allocation10] sm:$0xff] 0.0
    $region21: #{tpu_custom_call.1} parent=1 // pred_fallthru
      _
    %v63 = vld [vmem:[#allocation2] sm:$0xff]
    %v64 = vld [vmem:[#allocation5] sm:$0xff]
    %v65 = vlog2.pop %v63
    %v66 = vmul.f32 %v65, 0.6931472
    %v67 = vmax.f32 %v66, -100.0
    %v68 = vsub.f32 0.0, %v63
    %v69 = vadd.f32 %v68, 1.0
    %v70 = vlog2.pop %v69
    %v71 = vmul.f32 %v70, 0.6931472
    %v72 = vmul.f32 -0.5, %v68
    %v73 = vadd.f32 %v72, 1.0
    %v74 = vmul.f32 %v73, %v68
    %v75 = vand.u32 2147483647, %v68
    %vm76 = vcmp.lt.f32.partialorder %v75, 0.0004427343
    %v77 = vsel %vm76, %v74, %v71
    %v78 = vmax.f32 %v77, -100.0
    %v79 = vsub.f32 %v67, %v78
    %v80 = vmul.f32 %v64, %v79
    %v81 = vadd.f32 %v78, %v80
    %v82 = vmul.f32 %v63, %v64
    %v83 = vadd.f32 %v82, 0.0
    %v84 = vadd.f32 %v63, %v64
    %v85 = vadd.f32 %v84, 0.0
    %v86 = vadd.f32 %v81, 0.0
    %v87 = vadd.f32 %v83, 0.0
    %v88 = vadd.f32 %v85, 0.0
    %v89 = vadd.f32 %v86, 0.0
    %v90 = vld [vmem:[#allocation7] sm:$0xff]
    %v91 = vadd.f32 %v90, %v87
    %92 = vst [vmem:[#allocation7] sm:$0xff] %v91
    %v93 = vld [vmem:[#allocation8] sm:$0xff]
    %v94 = vadd.f32 %v93, %v88
    %95 = vst [vmem:[#allocation8] sm:$0xff] %v94
    %v96 = vld [vmem:[#allocation10] sm:$0xff]
    %v97 = vadd.f32 %v96, %v89
    %98 = vst [vmem:[#allocation10] sm:$0xff] %v97
    // Predicated region
    $region22: #{tpu_custom_call.1} parent=1 // pred_check
      _
    $region23: #{tpu_custom_call.1} parent=1 // pred_check_branch
      %100 = sbr.rel (0) target = $region25
    $region24: #{tpu_custom_call.1} parent=1 // pred_region
      %s102 = ssub.s32 128, 128
      %103 = vsyncadd [#allocation4], %s102
      %s105 = sshll.u32 [#allocation7], 4
      %s106 = int_to_ptr.vmem [resolvable:$true] %s105
      %108 = dma.vmem_to_hbm [thread:$0]  %s106, 128, %s2, [#allocation4]
    $region25: #{tpu_custom_call.1} parent=1 // pred_fallthru
      _
    // Predicated region
    $region26: #{tpu_custom_call.1} parent=1 // pred_check
      _
    $region27: #{tpu_custom_call.1} parent=1 // pred_check_branch
      %110 = sbr.rel (0) target = $region29
    $region28: #{tpu_custom_call.1} parent=1 // pred_region
      %s112 = ssub.s32 128, 128
      %113 = vsyncadd [#allocation9], %s112
      %s115 = sshll.u32 [#allocation8], 4
      %s116 = int_to_ptr.vmem [resolvable:$true] %s115
      %118 = dma.vmem_to_hbm [thread:$0]  %s116, 128, %s3, [#allocation9]
    $region29: #{tpu_custom_call.1} parent=1 // pred_fallthru
      _
    // Predicated region
    $region30: #{tpu_custom_call.1} parent=1 // pred_check
      _
    $region31: #{tpu_custom_call.1} parent=1 // pred_check_branch
      %120 = sbr.rel (0) target = $region33
    $region32: #{tpu_custom_call.1} parent=1 // pred_region
      %s122 = ssub.s32 128, 128
      %123 = vsyncadd [#allocation9], %s122
      %s125 = sshll.u32 [#allocation10], 4
      %s126 = int_to_ptr.vmem [resolvable:$true] %s125
      %128 = dma.vmem_to_hbm [thread:$0]  %s126, 128, %s4, [#allocation9]
    $region33: #{tpu_custom_call.1} parent=1 // pred_fallthru
      _
    // Predicated region
    $region34: #{tpu_custom_call.1} parent=1 // pred_check
      _
    $region35: #{tpu_custom_call.1} parent=1 // pred_check_branch
      %130 = sbr.rel (0) target = $region37
    $region36: #{tpu_custom_call.1} parent=1 // pred_region
      %131 = dma.done [#allocation4], 128
    $region37: #{tpu_custom_call.1} parent=1 // pred_fallthru
      _
    // Predicated region
    $region38: #{tpu_custom_call.1} parent=1 // pred_check
      _
    $region39: #{tpu_custom_call.1} parent=1 // pred_check_branch
      %133 = sbr.rel (0) target = $region41
    $region40: #{tpu_custom_call.1} parent=1 // pred_region
      %134 = dma.done [#allocation9], 128
    $region41: #{tpu_custom_call.1} parent=1 // pred_fallthru
      _
    // Predicated region
    $region42: #{tpu_custom_call.1} parent=1 // pred_check
      _
    $region43: #{tpu_custom_call.1} parent=1 // pred_check_branch
      %136 = sbr.rel (0) target = $region45
    $region44: #{tpu_custom_call.1} parent=1 // pred_region
      %137 = dma.done [#allocation9], 128
    $region45: #{tpu_custom_call.1} parent=1 // pred_fallthru
      _
    %138 = vsyncpa [#allocation3], 1
    %139 = vsyncpa [#allocation6], 1
    %140 = vsyncpa [#allocation4], 1
    %141 = vsyncpa [#allocation9], 1

</llo_original>
